<compile_context>
chip_gen: v6e
topology: v6e:2x2x1
jax: 0.10.0
libtpu: 0.0.40
codegen_flags: <defaults>
</compile_context>

<pallas_src>
import jax
import jax.numpy as jnp
from jax.experimental import pallas as pl
from jax.experimental.pallas import tpu as pltpu

_LANE = 128
_PAD_BIAS = -1e30  # pad-lane logit bias: exp() underflows to exactly 0, no NaNs


def _round_up(x: int, m: int) -> int:
    return ((x + m - 1) // m) * m


def _cdiv(a: int, b: int) -> int:
    return (a + b - 1) // b


# ----------------------------- Pallas kernels ------------------------------ #
def _forward_tile(x_ref, w_refs, b_refs):
    """Fused FCEncoder (3 layers) + DiscreteHead (MLP + final) + log_softmax.

    Matmuls: bf16 operands, f32 accumulation. Elementwise/softmax: f32.
    Pad lanes of the final layer carry a -1e30 bias, so max/exp/sum ignore them.
    """
    h = x_ref[...].astype(jnp.bfloat16)
    for i in range(4):
        h = jnp.dot(h, w_refs[i][...],
                    preferred_element_type=jnp.float32) + b_refs[i][...]
        h = jnp.maximum(h, 0.0).astype(jnp.bfloat16)
    logit = jnp.dot(h, w_refs[4][...],
                    preferred_element_type=jnp.float32) + b_refs[4][...]
    m = jnp.max(logit, axis=-1, keepdims=True)
    z = logit - m
    lse = jnp.log(jnp.sum(jnp.exp(z), axis=-1, keepdims=True))
    return logit, z - lse


def _pg_kernel_both(x_ref,
                    w0, b0, w1, b1, w2, b2, w3, b3, w4, b4,
                    logit_ref, logp_ref):
    logit, logp = _forward_tile(x_ref, (w0, w1, w2, w3, w4),
                                (b0, b1, b2, b3, b4))
    logit_ref[...] = logit.astype(logit_ref.dtype)
    logp_ref[...] = logp.astype(logp_ref.dtype)


def _pg_kernel_dist(x_ref,
                    w0, b0, w1, b1, w2, b2, w3, b3, w4, b4,
                    logp_ref):
    _, logp = _forward_tile(x_ref, (w0, w1, w2, w3, w4),
                            (b0, b1, b2, b3, b4))
    logp_ref[...] = logp.astype(logp_ref.dtype)


# --------------------------- Lane-padding helper ---------------------------- #
def _pad_params_for_tpu(params, num_layers=5):
    """Zero-pad every layer's feature dims up to multiples of 128 lanes.

    - layer 0 keeps its raw obs_dim input (x is not padded -> no extra DMA).
    - hidden out-dims pad with zero columns / zero bias (ReLU(0)=0, so pad
      lanes stay exactly 0 and feed zero rows of the next weight -> identical).
    - the final layer's pad-lane bias is -1e30 so log_softmax ignores pads.
    """
    padded = {}
    prev_out_pad = None
    for n in range(num_layers):
        w = params[f"w{n}"]
        b = params[f"b{n}"]
        fin, fout = w.shape
        fin_pad = fin if n == 0 else prev_out_pad
        fout_pad = _round_up(fout, _LANE)
        wp = jnp.zeros((fin_pad, fout_pad), w.dtype).at[:fin, :fout].set(w)
        if n == num_layers - 1:
            bp = jnp.full((1, fout_pad), _PAD_BIAS, jnp.float32)
            bp = bp.at[:, :fout].set(b.astype(jnp.float32))
        else:
            bp = jnp.zeros((1, fout_pad), jnp.float32)
            bp = bp.at[:, :fout].set(b.astype(jnp.float32))
        padded[f"w{n}"] = wp
        padded[f"b{n}"] = bp
        prev_out_pad = fout_pad
    return padded


# ------------------------------- Wrapper ----------------------------------- #
def pg_forward(x, params, *, batch_tile: int = 2048, return_logit: bool = True):
    """Run the PG forward pass.

    x: (B, obs_dim) float32.
    Returns {'logit': (B, A) f32, 'dist': (B, A) f32} where 'dist' holds the
    normalized log-probs of the Categorical distribution ('logit' omitted when
    return_logit=False).
    """
    B, obs_dim = x.shape
    A = params["w4"].shape[1]

    # One-time lane padding of the (tiny) weight stack.
    pp = _pad_params_for_tpu(params)
    a_pad = pp["w4"].shape[1]

    # Batch tile: multiple of 16 (bf16 sublane packing).  Nudge to an even
    # number of tiles when tiled more than once, so v7x's two TensorCores stay
    # balanced under dimension_semantics=("parallel",) (no-op on v5e/v6e).
    tb = _round_up(min(batch_tile, _round_up(B, 16)), 16)
    n_tiles = _cdiv(B, tb)
    if n_tiles > 1 and n_tiles % 2 == 1:
        tb = _round_up(_cdiv(B, n_tiles + 1), 16)
        n_tiles = _cdiv(B, tb)
    b_pad = n_tiles * tb
    if b_pad != B:
        x = jnp.pad(x, ((0, b_pad - B), (0, 0)))
    grid = (n_tiles,)

    def _resident(shape):
        # Whole-array block with a constant index_map -> DMA'd once,
        # VMEM-resident across all grid iterations.
        return pl.BlockSpec(shape, lambda i: (0,) * len(shape))

    flat_args = [x]
    # TODO(synk): accept bf16 x from an upstream producer (halves the dominant
    # per-step input DMA); a wrapper-side cast here would just be an extra XLA
    # HBM pass, so we keep x in its incoming dtype.
    in_specs = [pl.BlockSpec((tb, obs_dim), lambda i: (i, 0))]
    for n in range(5):
        w = pp[f"w{n}"]
        b = pp[f"b{n}"]
        flat_args += [w, b]
        in_specs += [_resident(w.shape), _resident(b.shape)]

    out_block = pl.BlockSpec((tb, a_pad), lambda i: (i, 0))
    if return_logit:
        kernel = _pg_kernel_both
        out_specs = [out_block, out_block]
        out_shape = (jax.ShapeDtypeStruct((b_pad, a_pad), jnp.float32),
                     jax.ShapeDtypeStruct((b_pad, a_pad), jnp.float32))
        n_out = 2
    else:
        kernel = _pg_kernel_dist
        out_specs = out_block
        out_shape = jax.ShapeDtypeStruct((b_pad, a_pad), jnp.float32)
        n_out = 1

    # Explicit VMEM budget: double-buffered x tile + double-buffered outputs
    # + resident weights, with 2x headroom; clamped to [16 MiB, 48 MiB] so it
    # stays within v5e's scoped default floor and v7x's 64 MiB physical VMEM.
    weight_bytes = sum(int(pp[k].size) * pp[k].dtype.itemsize for k in pp)
    x_tile_bytes = tb * obs_dim * x.dtype.itemsize
    out_tile_bytes = tb * a_pad * 4
    vmem_needed = 2 * x_tile_bytes + 2 * n_out * out_tile_bytes + weight_bytes
    vmem_limit = int(min(max(2 * vmem_needed, 16 << 20), 48 << 20))

    # Advisory cost estimate for the XLA scheduler (padded shapes).
    flops = 2 * b_pad * sum(
        pp[f"w{n}"].shape[0] * pp[f"w{n}"].shape[1] for n in range(5))
    bytes_accessed = (x.size * x.dtype.itemsize
                      + n_out * b_pad * a_pad * 4
                      + weight_bytes)
    cost = pl.CostEstimate(flops=flops,
                           transcendentals=b_pad * (a_pad + 1),
                           bytes_accessed=bytes_accessed)

    outs = pl.pallas_call(
        kernel,
        out_shape=out_shape,
        grid=grid,
        in_specs=in_specs,
        out_specs=out_specs,
        compiler_params=pltpu.CompilerParams(
            dimension_semantics=("parallel",),
            vmem_limit_bytes=vmem_limit),
        cost_estimate=cost,
    )(*flat_args)

    if return_logit:
        logit, logp = outs
        return {"logit": logit[:B, :A], "dist": logp[:B, :A]}
    return {"dist": outs[:B, :A]}


# --------------------------- Parameter creation ----------------------------- #
def init_pg_params(key, obs_dim, action_dim, hidden_list=(128, 128, 64)):
    """Deterministic synthetic parameters (logical, unpadded shapes).

    Weights: (in, out) stored in bf16 (MXU-native); biases: (1, out) in f32.
    """
    h0, h1, h2 = hidden_list
    sizes = [
        (obs_dim, h0),    # FCEncoder.init
        (h0, h1),         # FCEncoder.main[0]
        (h1, h2),         # FCEncoder.main[1]
        (h2, h2),         # DiscreteHead MLP
        (h2, action_dim)  # DiscreteHead final
    ]
    params = {}
    keys = jax.random.split(key, len(sizes))
    for i, ((fan_in, fan_out), k) in enumerate(zip(sizes, keys)):
        kw, kb = jax.random.split(k)
        bound = 1.0 / jnp.sqrt(fan_in)
        w = jax.random.uniform(kw, (fan_in, fan_out), jnp.float32,
                               minval=-bound, maxval=bound)
        b = jax.random.uniform(kb, (1, fan_out), jnp.float32,
                               minval=-bound, maxval=bound)
        params[f"w{i}"] = w.astype(jnp.bfloat16)
        params[f"b{i}"] = b
    return params


# ---------------------------- Pure-JAX reference ---------------------------- #
def _pg_forward_ref(x, params):
    # Deliberately follows the same bf16-matmul / f32-accum path as the kernel;
    # deviates from a pure-f32 PyTorch reference by ~1e-2 (acceptable for RL).
    h = x.astype(jnp.bfloat16)
    for n in range(4):
        h = jnp.dot(h, params[f"w{n}"], preferred_element_type=jnp.float32)
        h = jnp.maximum(h + params[f"b{n}"], 0.0).astype(jnp.bfloat16)
    logit = jnp.dot(h, params["w4"],
                    preferred_element_type=jnp.float32) + params["b4"]
    return logit, jax.nn.log_softmax(logit, axis=-1)


# --------------------------------- Main ------------------------------------ #
if __name__ == "__main__":
    key = jax.random.PRNGKey(0)
    k_x, k_p = jax.random.split(key)

    B, OBS, ACT = 8, 32, 6                       # small shapes for the demo
    x = jax.random.normal(k_x, (B, OBS), dtype=jnp.float32)
    params = init_pg_params(k_p, OBS, ACT)

    out = pg_forward(x, params)
    jax.block_until_ready(out["logit"])
    jax.block_until_ready(out["dist"])

    assert out["logit"].shape == (B, ACT)
    assert out["dist"].shape == (B, ACT)
    # dist log-probs must normalize to 1 per row (pad lanes carried -1e30 bias)
    assert jnp.allclose(jnp.exp(out["dist"]).sum(-1), 1.0, atol=1e-5)

    # Compare against a pure-JAX reference (same bf16 matmul / f32 accum path).
    ref_logit, ref_logp = _pg_forward_ref(x, params)
    assert jnp.allclose(out["logit"], ref_logit, atol=1e-2, rtol=1e-2)
    assert jnp.allclose(out["dist"], ref_logp, atol=1e-2, rtol=1e-2)

    # dist-only path (drops the duplicate logit output / HBM writeback).
    out_d = pg_forward(x, params, return_logit=False)
    jax.block_until_ready(out_d["dist"])
    assert jnp.allclose(out_d["dist"], ref_logp, atol=1e-2, rtol=1e-2)

    print("KERNEL_OK")
</pallas_src>

<mosaic_0001>
module attributes {stable_mosaic.version = 11 : i64} {
  func.func @_pg_kernel_both(%arg0: i32, %arg1: memref<16x32xf32, #tpu.memory_space<vmem>>, %arg2: memref<32x128xbf16, #tpu.memory_space<vmem>>, %arg3: memref<1x128xf32, #tpu.memory_space<vmem>>, %arg4: memref<128x128xbf16, #tpu.memory_space<vmem>>, %arg5: memref<1x128xf32, #tpu.memory_space<vmem>>, %arg6: memref<128x128xbf16, #tpu.memory_space<vmem>>, %arg7: memref<1x128xf32, #tpu.memory_space<vmem>>, %arg8: memref<128x128xbf16, #tpu.memory_space<vmem>>, %arg9: memref<1x128xf32, #tpu.memory_space<vmem>>, %arg10: memref<128x128xbf16, #tpu.memory_space<vmem>>, %arg11: memref<1x128xf32, #tpu.memory_space<vmem>>, %arg12: memref<16x128xf32, #tpu.memory_space<vmem>>, %arg13: memref<16x128xf32, #tpu.memory_space<vmem>>) attributes {dimension_semantics = [#tpu.dimension_semantics<parallel>], iteration_bounds = array<i64: 1>, scalar_prefetch = 0 : i64, scratch_operands = 0 : i64, tpu.core_type = #tpu.core_type<tc>, window_params = [{transform_indices = @transform_0, window_bounds = array<i64: 16, 32>}, {pipeline_mode = #tpu.pipeline_mode<synchronous>, transform_indices = @transform_1, window_bounds = array<i64: 32, 128>}, {pipeline_mode = #tpu.pipeline_mode<synchronous>, transform_indices = @transform_2, window_bounds = array<i64: 1, 128>}, {pipeline_mode = #tpu.pipeline_mode<synchronous>, transform_indices = @transform_3, window_bounds = array<i64: 128, 128>}, {pipeline_mode = #tpu.pipeline_mode<synchronous>, transform_indices = @transform_4, window_bounds = array<i64: 1, 128>}, {pipeline_mode = #tpu.pipeline_mode<synchronous>, transform_indices = @transform_5, window_bounds = array<i64: 128, 128>}, {pipeline_mode = #tpu.pipeline_mode<synchronous>, transform_indices = @transform_6, window_bounds = array<i64: 1, 128>}, {pipeline_mode = #tpu.pipeline_mode<synchronous>, transform_indices = @transform_7, window_bounds = array<i64: 128, 128>}, {pipeline_mode = #tpu.pipeline_mode<synchronous>, transform_indices = @transform_8, window_bounds = array<i64: 1, 128>}, {pipeline_mode = #tpu.pipeline_mode<synchronous>, transform_indices = @transform_9, window_bounds = array<i64: 128, 128>}, {pipeline_mode = #tpu.pipeline_mode<synchronous>, transform_indices = @transform_10, window_bounds = array<i64: 1, 128>}, {transform_indices = @transform_11, window_bounds = array<i64: 16, 128>}, {transform_indices = @transform_12, window_bounds = array<i64: 16, 128>}]} {
    %c0 = arith.constant 0 : index
    %c0_0 = arith.constant 0 : index
    %0 = vector.load %arg1[%c0, %c0_0] : memref<16x32xf32, #tpu.memory_space<vmem>>, vector<16x32xf32>
    %1 = arith.truncf %0 : vector<16x32xf32> to vector<16x32xbf16>
    %c0_1 = arith.constant 0 : index
    %c0_2 = arith.constant 0 : index
    %2 = vector.load %arg2[%c0_1, %c0_2] : memref<32x128xbf16, #tpu.memory_space<vmem>>, vector<32x128xbf16>
    %cst = arith.constant dense<0.000000e+00> : vector<16x128xf32>
    %3 = tpu.matmul %1, %2, %cst {dimension_numbers = #tpu.dot_dimension_numbers<[1], [0], [0], [1], [0, 0, 1, 1], [], []>} : vector<16x32xbf16>, vector<32x128xbf16>, vector<16x128xf32> -> vector<16x128xf32>
    %c0_3 = arith.constant 0 : index
    %c0_4 = arith.constant 0 : index
    %4 = vector.load %arg3[%c0_3, %c0_4] : memref<1x128xf32, #tpu.memory_space<vmem>>, vector<1x128xf32>
    %5 = vector.broadcast %4 : vector<1x128xf32> to vector<16x128xf32>
    %6 = arith.addf %3, %5 : vector<16x128xf32>
    %cst_5 = arith.constant 0.000000e+00 : f32
    %7 = vector.broadcast %cst_5 : f32 to vector<16x128xf32>
    %8 = arith.maximumf %6, %7 : vector<16x128xf32>
    %9 = arith.truncf %8 : vector<16x128xf32> to vector<16x128xbf16>
    %c0_6 = arith.constant 0 : index
    %c0_7 = arith.constant 0 : index
    %10 = vector.load %arg4[%c0_6, %c0_7] : memref<128x128xbf16, #tpu.memory_space<vmem>>, vector<128x128xbf16>
    %cst_8 = arith.constant dense<0.000000e+00> : vector<16x128xf32>
    %11 = tpu.matmul %9, %10, %cst_8 {dimension_numbers = #tpu.dot_dimension_numbers<[1], [0], [0], [1], [0, 0, 1, 1], [], []>} : vector<16x128xbf16>, vector<128x128xbf16>, vector<16x128xf32> -> vector<16x128xf32>
    %c0_9 = arith.constant 0 : index
    %c0_10 = arith.constant 0 : index
    %12 = vector.load %arg5[%c0_9, %c0_10] : memref<1x128xf32, #tpu.memory_space<vmem>>, vector<1x128xf32>
    %13 = vector.broadcast %12 : vector<1x128xf32> to vector<16x128xf32>
    %14 = arith.addf %11, %13 : vector<16x128xf32>
    %cst_11 = arith.constant 0.000000e+00 : f32
    %15 = vector.broadcast %cst_11 : f32 to vector<16x128xf32>
    %16 = arith.maximumf %14, %15 : vector<16x128xf32>
    %17 = arith.truncf %16 : vector<16x128xf32> to vector<16x128xbf16>
    %c0_12 = arith.constant 0 : index
    %c0_13 = arith.constant 0 : index
    %18 = vector.load %arg6[%c0_12, %c0_13] : memref<128x128xbf16, #tpu.memory_space<vmem>>, vector<128x128xbf16>
    %cst_14 = arith.constant dense<0.000000e+00> : vector<16x128xf32>
    %19 = tpu.matmul %17, %18, %cst_14 {dimension_numbers = #tpu.dot_dimension_numbers<[1], [0], [0], [1], [0, 0, 1, 1], [], []>} : vector<16x128xbf16>, vector<128x128xbf16>, vector<16x128xf32> -> vector<16x128xf32>
    %c0_15 = arith.constant 0 : index
    %c0_16 = arith.constant 0 : index
    %20 = vector.load %arg7[%c0_15, %c0_16] : memref<1x128xf32, #tpu.memory_space<vmem>>, vector<1x128xf32>
    %21 = vector.broadcast %20 : vector<1x128xf32> to vector<16x128xf32>
    %22 = arith.addf %19, %21 : vector<16x128xf32>
    %cst_17 = arith.constant 0.000000e+00 : f32
    %23 = vector.broadcast %cst_17 : f32 to vector<16x128xf32>
    %24 = arith.maximumf %22, %23 : vector<16x128xf32>
    %25 = arith.truncf %24 : vector<16x128xf32> to vector<16x128xbf16>
    %c0_18 = arith.constant 0 : index
    %c0_19 = arith.constant 0 : index
    %26 = vector.load %arg8[%c0_18, %c0_19] : memref<128x128xbf16, #tpu.memory_space<vmem>>, vector<128x128xbf16>
    %cst_20 = arith.constant dense<0.000000e+00> : vector<16x128xf32>
    %27 = tpu.matmul %25, %26, %cst_20 {dimension_numbers = #tpu.dot_dimension_numbers<[1], [0], [0], [1], [0, 0, 1, 1], [], []>} : vector<16x128xbf16>, vector<128x128xbf16>, vector<16x128xf32> -> vector<16x128xf32>
    %c0_21 = arith.constant 0 : index
    %c0_22 = arith.constant 0 : index
    %28 = vector.load %arg9[%c0_21, %c0_22] : memref<1x128xf32, #tpu.memory_space<vmem>>, vector<1x128xf32>
    %29 = vector.broadcast %28 : vector<1x128xf32> to vector<16x128xf32>
    %30 = arith.addf %27, %29 : vector<16x128xf32>
    %cst_23 = arith.constant 0.000000e+00 : f32
    %31 = vector.broadcast %cst_23 : f32 to vector<16x128xf32>
    %32 = arith.maximumf %30, %31 : vector<16x128xf32>
    %33 = arith.truncf %32 : vector<16x128xf32> to vector<16x128xbf16>
    %c0_24 = arith.constant 0 : index
    %c0_25 = arith.constant 0 : index
    %34 = vector.load %arg10[%c0_24, %c0_25] : memref<128x128xbf16, #tpu.memory_space<vmem>>, vector<128x128xbf16>
    %cst_26 = arith.constant dense<0.000000e+00> : vector<16x128xf32>
    %35 = tpu.matmul %33, %34, %cst_26 {dimension_numbers = #tpu.dot_dimension_numbers<[1], [0], [0], [1], [0, 0, 1, 1], [], []>} : vector<16x128xbf16>, vector<128x128xbf16>, vector<16x128xf32> -> vector<16x128xf32>
    %c0_27 = arith.constant 0 : index
    %c0_28 = arith.constant 0 : index
    %36 = vector.load %arg11[%c0_27, %c0_28] : memref<1x128xf32, #tpu.memory_space<vmem>>, vector<1x128xf32>
    %37 = vector.broadcast %36 : vector<1x128xf32> to vector<16x128xf32>
    %38 = arith.addf %35, %37 : vector<16x128xf32>
    %cst_29 = arith.constant dense<0xFF800000> : vector<16xf32>
    %39 = vector.multi_reduction <maximumf>, %38, %cst_29 [1] : vector<16x128xf32> to vector<16xf32>
    %40 = vector.shape_cast %39 : vector<16xf32> to vector<16x1xf32>
    %41 = vector.broadcast %40 : vector<16x1xf32> to vector<16x128xf32>
    %42 = arith.subf %38, %41 : vector<16x128xf32>
    %43 = math.exp %42 : vector<16x128xf32>
    %cst_30 = arith.constant dense<0.000000e+00> : vector<16xf32>
    %44 = vector.multi_reduction <add>, %43, %cst_30 [1] : vector<16x128xf32> to vector<16xf32>
    %45 = vector.shape_cast %44 : vector<16xf32> to vector<16x1xf32>
    %46 = math.log %45 : vector<16x1xf32>
    %47 = vector.broadcast %46 : vector<16x1xf32> to vector<16x128xf32>
    %48 = arith.subf %42, %47 : vector<16x128xf32>
    %c0_31 = arith.constant 0 : index
    %c0_32 = arith.constant 0 : index
    %49 = vector.load %arg12[%c0_31, %c0_32] : memref<16x128xf32, #tpu.memory_space<vmem>>, vector<16x128xf32>
    tpu.vector_store %arg12[%c0_31, %c0_32], %38 {strides = array<i32>} : memref<16x128xf32, #tpu.memory_space<vmem>>, vector<16x128xf32>,
    %c0_33 = arith.constant 0 : index
    %c0_34 = arith.constant 0 : index
    %50 = vector.load %arg13[%c0_33, %c0_34] : memref<16x128xf32, #tpu.memory_space<vmem>>, vector<16x128xf32>
    tpu.vector_store %arg13[%c0_33, %c0_34], %48 {strides = array<i32>} : memref<16x128xf32, #tpu.memory_space<vmem>>, vector<16x128xf32>,
    return
  }
  func.func @transform_0(%arg0: i32) -> (i32, i32) {
    %c0_i32 = arith.constant 0 : i32
    %c0_i32_0 = arith.constant 0 : i32
    return %arg0, %c0_i32 : i32, i32
  }
  func.func @transform_1(%arg0: i32) -> (i32, i32) {
    %c0_i32 = arith.constant 0 : i32
    %c0_i32_0 = arith.constant 0 : i32
    %c0_i32_1 = arith.constant 0 : i32
    return %c0_i32, %c0_i32_0 : i32, i32
  }
  func.func @transform_2(%arg0: i32) -> (i32, i32) {
    %c0_i32 = arith.constant 0 : i32
    %c0_i32_0 = arith.constant 0 : i32
    %c0_i32_1 = arith.constant 0 : i32
    return %c0_i32, %c0_i32_0 : i32, i32
  }
  func.func @transform_3(%arg0: i32) -> (i32, i32) {
    %c0_i32 = arith.constant 0 : i32
    %c0_i32_0 = arith.constant 0 : i32
    %c0_i32_1 = arith.constant 0 : i32
    return %c0_i32, %c0_i32_0 : i32, i32
  }
  func.func @transform_4(%arg0: i32) -> (i32, i32) {
    %c0_i32 = arith.constant 0 : i32
    %c0_i32_0 = arith.constant 0 : i32
    %c0_i32_1 = arith.constant 0 : i32
    return %c0_i32, %c0_i32_0 : i32, i32
  }
  func.func @transform_5(%arg0: i32) -> (i32, i32) {
    %c0_i32 = arith.constant 0 : i32
    %c0_i32_0 = arith.constant 0 : i32
    %c0_i32_1 = arith.constant 0 : i32
    return %c0_i32, %c0_i32_0 : i32, i32
  }
  func.func @transform_6(%arg0: i32) -> (i32, i32) {
    %c0_i32 = arith.constant 0 : i32
    %c0_i32_0 = arith.constant 0 : i32
    %c0_i32_1 = arith.constant 0 : i32
    return %c0_i32, %c0_i32_0 : i32, i32
  }
  func.func @transform_7(%arg0: i32) -> (i32, i32) {
    %c0_i32 = arith.constant 0 : i32
    %c0_i32_0 = arith.constant 0 : i32
    %c0_i32_1 = arith.constant 0 : i32
    return %c0_i32, %c0_i32_0 : i32, i32
  }
  func.func @transform_8(%arg0: i32) -> (i32, i32) {
    %c0_i32 = arith.constant 0 : i32
    %c0_i32_0 = arith.constant 0 : i32
    %c0_i32_1 = arith.constant 0 : i32
    return %c0_i32, %c0_i32_0 : i32, i32
  }
  func.func @transform_9(%arg0: i32) -> (i32, i32) {
    %c0_i32 = arith.constant 0 : i32
    %c0_i32_0 = arith.constant 0 : i32
    %c0_i32_1 = arith.constant 0 : i32
    return %c0_i32, %c0_i32_0 : i32, i32
  }
  func.func @transform_10(%arg0: i32) -> (i32, i32) {
    %c0_i32 = arith.constant 0 : i32
    %c0_i32_0 = arith.constant 0 : i32
    %c0_i32_1 = arith.constant 0 : i32
    return %c0_i32, %c0_i32_0 : i32, i32
  }
  func.func @transform_11(%arg0: i32) -> (i32, i32) {
    %c0_i32 = arith.constant 0 : i32
    %c0_i32_0 = arith.constant 0 : i32
    return %arg0, %c0_i32 : i32, i32
  }
  func.func @transform_12(%arg0: i32) -> (i32, i32) {
    %c0_i32 = arith.constant 0 : i32
    %c0_i32_0 = arith.constant 0 : i32
    return %arg0, %c0_i32 : i32, i32
  }
}

</mosaic_0001>

<llo_original>
// kernel: tpu_custom_call.1
$region0: #{tpu_custom_call.1}
  #allocation0 [shape = 'u32[]', space=smem, size = 0x4, offset = 0x4, fixed_abs, tag = 'smem constant byte address 0x4 - core index']
  #allocation1 [shape = 'u32[144,128]{1,0:T(1,128)}', space=vmem, size = 0x12000, scoped, tag = 'internal scratch']
  %s0 = inlined_call_operand.hbm [shape: f32[16,32], index: 0, kind: input, shape index: {}]
  %s1 = inlined_call_operand.hbm [shape: bf16[32,128], index: 1, kind: input, shape index: {}]
  %s2 = inlined_call_operand.vmem [shape: f32[1,128], index: 2, kind: input, shape index: {}]
  %s3 = inlined_call_operand.hbm [shape: bf16[128,128], index: 3, kind: input, shape index: {}]
  %s4 = inlined_call_operand.vmem [shape: f32[1,128], index: 4, kind: input, shape index: {}]
  %s5 = inlined_call_operand.hbm [shape: bf16[128,128], index: 5, kind: input, shape index: {}]
  %s6 = inlined_call_operand.vmem [shape: f32[1,128], index: 6, kind: input, shape index: {}]
  %s7 = inlined_call_operand.hbm [shape: bf16[128,128], index: 7, kind: input, shape index: {}]
  %s8 = inlined_call_operand.vmem [shape: f32[1,128], index: 8, kind: input, shape index: {}]
  %s9 = inlined_call_operand.hbm [shape: bf16[128,128], index: 9, kind: input, shape index: {}]
  %s10 = inlined_call_operand.vmem [shape: f32[1,128], index: 10, kind: input, shape index: {}]
  %s11 = inlined_call_operand.hbm [shape: f32[16,128], index: 11, kind: output, shape index: {0}]
  %s12 = inlined_call_operand.hbm [shape: f32[16,128], index: 12, kind: output, shape index: {1}]
  %13 = xla_tuple %s11, %s12
  %s14 = sld [smem:[#allocation0]]
  $region86: #{tpu_custom_call.1} parent=0
    _
  %s16 = ssub.s32 1, %s14
  %s17 = scalar_select 0, %s16, %s14
  $region1: #{tpu_custom_call.1} parent=0
    #allocation2 [shape = 'u8[8192]{0}', space=vmem, size = 0x2000, scoped, tag = 'input window, operand 0, single buffered']
    #allocation3 [shape = 's32[1]{0}', space=sflag, size = 0x4, scoped, tag = 'scoped memory for tpu_custom_call.1']
    #allocation4 [shape = 's32[1]{0}', space=sflag, size = 0x4, scoped, tag = 'scoped memory for tpu_custom_call.1']
    #allocation5 [shape = 'u8[8192]{0}', space=vmem, size = 0x2000, scoped, tag = 'input window, operand 1, single buffered']
    #allocation6 [shape = 's32[1]{0}', space=sflag, size = 0x4, scoped, tag = 'scoped memory for tpu_custom_call.1']
    #allocation7 [shape = 'u8[32768]{0}', space=vmem, size = 0x8000, scoped, tag = 'input window, operand 3, single buffered']
    #allocation8 [shape = 'u8[32768]{0}', space=vmem, size = 0x8000, scoped, tag = 'input window, operand 5, single buffered']
    #allocation9 [shape = 's32[1]{0}', space=sflag, size = 0x4, scoped, tag = 'scoped memory for tpu_custom_call.1']
    #allocation10 [shape = 'u8[32768]{0}', space=vmem, size = 0x8000, scoped, tag = 'input window, operand 7, single buffered']
    #allocation11 [shape = 'u8[32768]{0}', space=vmem, size = 0x8000, scoped, tag = 'input window, operand 9, single buffered']
    #allocation12 [shape = 's32[1]{0}', space=sflag, size = 0x4, scoped, tag = 'scoped memory for tpu_custom_call.1']
    #allocation13 [shape = 'u8[8192]{0}', space=vmem, size = 0x2000, scoped, tag = 'output window, operand 0, single buffered']
    #allocation14 [shape = 'u8[8192]{0}', space=vmem, size = 0x2000, scoped, tag = 'output window, operand 1, single buffered']
    #allocation15 [shape = 's32[1]{0}', space=sflag, size = 0x4, scoped, tag = 'scoped memory for tpu_custom_call.1']
    %18 = vsyncpa [#allocation3], 0
    %19 = vsyncpa [#allocation6], 0
    %20 = vsyncpa [#allocation9], 0
    %21 = vsyncpa [#allocation12], 0
    %22 = vsyncpa [#allocation4], 0
    %23 = vsyncpa [#allocation15], 0
    // Predicated region
    $region2: #{tpu_custom_call.1} parent=1 // pred_check
      _
    $region3: #{tpu_custom_call.1} parent=1 // pred_check_branch
      %25 = sbr.rel (0) target = $region5
    $region4: #{tpu_custom_call.1} parent=1 // pred_region
      %s27 = ssub.s32 256, 256
      %28 = vsyncadd [#allocation3], %s27
      %s29 = sshll.u32 [#allocation2], 4
      %s30 = int_to_ptr.vmem [resolvable:$true] %s29
      %35 = dma.hbm_to_vmem [thread:$0]  %s0, 256, %s30, [#allocation3], 128, 128, 8
    $region5: #{tpu_custom_call.1} parent=1 // pred_fallthru
      _
    // Predicated region
    $region6: #{tpu_custom_call.1} parent=1 // pred_check
      _
    $region7: #{tpu_custom_call.1} parent=1 // pred_check_branch
      %37 = sbr.rel (0) target = $region9
    $region8: #{tpu_custom_call.1} parent=1 // pred_region
      %s39 = ssub.s32 256, 256
      %40 = vsyncadd [#allocation6], %s39
      %s41 = sshll.u32 [#allocation5], 4
      %s42 = int_to_ptr.vmem [resolvable:$true] %s41
      %47 = dma.hbm_to_vmem [thread:$0]  %s1, 256, %s42, [#allocation6], 64, 64, 4
    $region9: #{tpu_custom_call.1} parent=1 // pred_fallthru
      _
    // Predicated region
    $region10: #{tpu_custom_call.1} parent=1 // pred_check
      _
    $region11: #{tpu_custom_call.1} parent=1 // pred_check_branch
      %49 = sbr.rel (0) target = $region13
    $region12: #{tpu_custom_call.1} parent=1 // pred_region
      _
    $region13: #{tpu_custom_call.1} parent=1 // pred_fallthru
      _
    // Predicated region
    $region14: #{tpu_custom_call.1} parent=1 // pred_check
      _
    $region15: #{tpu_custom_call.1} parent=1 // pred_check_branch
      %51 = sbr.rel (0) target = $region17
    $region16: #{tpu_custom_call.1} parent=1 // pred_region
      %s53 = ssub.s32 1024, 1024
      %54 = vsyncadd [#allocation6], %s53
      %s55 = sshll.u32 [#allocation7], 4
      %s56 = int_to_ptr.vmem [resolvable:$true] %s55
      %61 = dma.hbm_to_vmem [thread:$0]  %s3, 1024, %s56, [#allocation6], 64, 64, 4
    $region17: #{tpu_custom_call.1} parent=1 // pred_fallthru
      _
    // Predicated region
    $region18: #{tpu_custom_call.1} parent=1 // pred_check
      _
    $region19: #{tpu_custom_call.1} parent=1 // pred_check_branch
      %63 = sbr.rel (0) target = $region21
    $region20: #{tpu_custom_call.1} parent=1 // pred_region
      _
    $region21: #{tpu_custom_call.1} parent=1 // pred_fallthru
      _
    // Predicated region
    $region22: #{tpu_custom_call.1} parent=1 // pred_check
      _
    $region23: #{tpu_custom_call.1} parent=1 // pred_check_branch
      %65 = sbr.rel (0) target = $region25
    $region24: #{tpu_custom_call.1} parent=1 // pred_region
      %s67 = ssub.s32 1024, 1024
      %68 = vsyncadd [#allocation9], %s67
      %s69 = sshll.u32 [#allocation8], 4
      %s70 = int_to_ptr.vmem [resolvable:$true] %s69
      %75 = dma.hbm_to_vmem [thread:$0]  %s5, 1024, %s70, [#allocation9], 64, 64, 4
    $region25: #{tpu_custom_call.1} parent=1 // pred_fallthru
      _
    // Predicated region
    $region26: #{tpu_custom_call.1} parent=1 // pred_check
      _
    $region27: #{tpu_custom_call.1} parent=1 // pred_check_branch
      %77 = sbr.rel (0) target = $region29
    $region28: #{tpu_custom_call.1} parent=1 // pred_region
      _
    $region29: #{tpu_custom_call.1} parent=1 // pred_fallthru
      _
    // Predicated region
    $region30: #{tpu_custom_call.1} parent=1 // pred_check
      _
    $region31: #{tpu_custom_call.1} parent=1 // pred_check_branch
      %79 = sbr.rel (0) target = $region33
    $region32: #{tpu_custom_call.1} parent=1 // pred_region
      %s81 = ssub.s32 1024, 1024
      %82 = vsyncadd [#allocation9], %s81
      %s83 = sshll.u32 [#allocation10], 4
      %s84 = int_to_ptr.vmem [resolvable:$true] %s83
      %89 = dma.hbm_to_vmem [thread:$0]  %s7, 1024, %s84, [#allocation9], 64, 64, 4
    $region33: #{tpu_custom_call.1} parent=1 // pred_fallthru
      _
    // Predicated region
    $region34: #{tpu_custom_call.1} parent=1 // pred_check
      _
    $region35: #{tpu_custom_call.1} parent=1 // pred_check_branch
      %91 = sbr.rel (0) target = $region37
    $region36: #{tpu_custom_call.1} parent=1 // pred_region
      _
    $region37: #{tpu_custom_call.1} parent=1 // pred_fallthru
      _
    // Predicated region
    $region38: #{tpu_custom_call.1} parent=1 // pred_check
      _
    $region39: #{tpu_custom_call.1} parent=1 // pred_check_branch
      %93 = sbr.rel (0) target = $region41
    $region40: #{tpu_custom_call.1} parent=1 // pred_region
      %s95 = ssub.s32 1024, 1024
      %96 = vsyncadd [#allocation12], %s95
      %s97 = sshll.u32 [#allocation11], 4
      %s98 = int_to_ptr.vmem [resolvable:$true] %s97
      %103 = dma.hbm_to_vmem [thread:$0]  %s9, 1024, %s98, [#allocation12], 64, 64, 4
    $region41: #{tpu_custom_call.1} parent=1 // pred_fallthru
      _
    // Predicated region
    $region42: #{tpu_custom_call.1} parent=1 // pred_check
      _
    $region43: #{tpu_custom_call.1} parent=1 // pred_check_branch
      %105 = sbr.rel (0) target = $region45
    $region44: #{tpu_custom_call.1} parent=1 // pred_region
      _
    $region45: #{tpu_custom_call.1} parent=1 // pred_fallthru
      _
    // Predicated region
    $region46: #{tpu_custom_call.1} parent=1 // pred_check
      _
    $region47: #{tpu_custom_call.1} parent=1 // pred_check_branch
      %107 = sbr.rel (0) target = $region49
    $region48: #{tpu_custom_call.1} parent=1 // pred_region
      %108 = dma.done [#allocation3], 256
    $region49: #{tpu_custom_call.1} parent=1 // pred_fallthru
      _
    // Predicated region
    $region50: #{tpu_custom_call.1} parent=1 // pred_check
      _
    $region51: #{tpu_custom_call.1} parent=1 // pred_check_branch
      %110 = sbr.rel (0) target = $region53
    $region52: #{tpu_custom_call.1} parent=1 // pred_region
      %111 = dma.done [#allocation6], 256
    $region53: #{tpu_custom_call.1} parent=1 // pred_fallthru
      _
    // Predicated region
    $region54: #{tpu_custom_call.1} parent=1 // pred_check
      _
    $region55: #{tpu_custom_call.1} parent=1 // pred_check_branch
      %113 = sbr.rel (0) target = $region57
    $region56: #{tpu_custom_call.1} parent=1 // pred_region
      %114 = dma.done [#allocation6], 1024
    $region57: #{tpu_custom_call.1} parent=1 // pred_fallthru
      _
    // Predicated region
    $region58: #{tpu_custom_call.1} parent=1 // pred_check
      _
    $region59: #{tpu_custom_call.1} parent=1 // pred_check_branch
      %116 = sbr.rel (0) target = $region61
    $region60: #{tpu_custom_call.1} parent=1 // pred_region
      %117 = dma.done [#allocation9], 1024
    $region61: #{tpu_custom_call.1} parent=1 // pred_fallthru
      _
    // Predicated region
    $region62: #{tpu_custom_call.1} parent=1 // pred_check
      _
    $region63: #{tpu_custom_call.1} parent=1 // pred_check_branch
      %119 = sbr.rel (0) target = $region65
    $region64: #{tpu_custom_call.1} parent=1 // pred_region
      %120 = dma.done [#allocation9], 1024
    $region65: #{tpu_custom_call.1} parent=1 // pred_fallthru
      _
    // Predicated region
    $region66: #{tpu_custom_call.1} parent=1 // pred_check
      _
    $region67: #{tpu_custom_call.1} parent=1 // pred_check_branch
      %122 = sbr.rel (0) target = $region69
    $region68: #{tpu_custom_call.1} parent=1 // pred_region
      %123 = dma.done [#allocation12], 1024
    $region69: #{tpu_custom_call.1} parent=1 // pred_fallthru
      _
    %v125 = vld [vmem:[#allocation2] sm:$0xff]
    %v126 = vld [vmem:[#allocation2 + $0x8] sm:$0xff]
    %v127 = vpack.c.bf16 %v126, %v125
    %v128 = vld [vmem:[#allocation5] sm:$0xf]
    %v129 = vld [vmem:[#allocation5 + $0x4] sm:$0xf]
    %v130 = vld [vmem:[#allocation5 + $0x8] sm:$0xf]
    %v131 = vld [vmem:[#allocation5 + $0xc] sm:$0xf]
    %v132 = vld [vmem:[%s2] sm:$0x1]
    %v134 = vlaneseq
    %v135 = vshrl.u32 %v134, 7
    %v136 = vsub.s32 0, %v135
    %v137 = vrot.slane %v132, %v136
    %v143 = vunpack.c.l.b16 %v128
    %v144 = vunpack.c.l.b16 %v129
    %v145 = vunpack.c.l.b16 %v130
    %v146 = vunpack.c.l.b16 %v131
    %v147 = vpack.c.b16 %v144, %v143
    %v148 = vpack.c.b16 %v146, %v145
    %vm151 = vcmask 261120
    %v153 = vsel %vm151, %v127, 0
    %155 = vmatprep.subr.bf16.mxu0 0
    %156 = vmatpush1.bf16.msra.mxu0 0
    %157 = vmatprep.subr.bf16.mxu0 0
    %158 = vmatpush1.bf16.msra.mxu0 0
    %159 = vmatprep.subr.bf16.mxu0 0
    %160 = vmatpush1.bf16.msra.mxu0 0
    %161 = vmatprep.subr.bf16.mxu0 0
    %162 = vmatpush1.bf16.msra.mxu0 0
    %163 = vmatprep.subr.bf16.mxu0 0
    %164 = vmatpush1.bf16.msra.mxu0 0
    %165 = vmatprep.subr.bf16.mxu0 0
    %166 = vmatpush1.bf16.msra.mxu0 0
    %167 = vmatprep.subr.bf16.mxu0 0
    %168 = vmatpush1.bf16.msra.mxu0 %v148
    %169 = vmatprep.subr.bf16.mxu0 0
    %170 = vmatpush1.bf16.msra.mxu0 %v147
    %171 = vmatprep.subr.bf16.mxu0 0
    %172 = vmatpush2.bf16.msra.mxu0 0
    %173 = vmatprep.subr.bf16.mxu0 0
    %174 = vmatpush2.bf16.msra.mxu0 0
    %175 = vmatprep.subr.bf16.mxu0 0
    %176 = vmatpush2.bf16.msra.mxu0 0
    %177 = vmatprep.subr.bf16.mxu0 0
    %178 = vmatpush2.bf16.msra.mxu0 0
    %179 = vmatprep.subr.bf16.mxu0 0
    %180 = vmatpush2.bf16.msra.mxu0 0
    %181 = vmatprep.subr.bf16.mxu0 0
    %182 = vmatpush2.bf16.msra.mxu0 0
    %183 = vmatprep.subr.bf16.mxu0 0
    %184 = vmatpush2.bf16.msra.mxu0 0
    %185 = vmatprep.subr.bf16.mxu0 0
    %186 = vmatpush2.bf16.msra.mxu0 0
    %187 = vmatprep.mubr.bf16.mxu0 0
    %188 = vmatmul.mubr.bf16.gmra.mxu0 %v153
    %v189 = vpop.f32.mrf.mxu0
    %v190 = vadd.f32 %v137, %v189
    %v191 = vpop.f32.mrf.mxu0
    %v192 = vpop.f32.mrf.mxu0
    %v193 = vadd.f32 %v137, %v192
    %v194 = vpop.f32.mrf.mxu0
    %195 = vdwg.mxu0
    %v196 = vmax.f32 %v190, 0.0
    %v197 = vmax.f32 %v193, 0.0
    %v198 = vpack.c.bf16 %v197, %v196
    %v199 = vld [vmem:[#allocation7] sm:$0xf]
    %v200 = vld [vmem:[#allocation7 + $0x4] sm:$0xf]
    %v201 = vld [vmem:[#allocation7 + $0x8] sm:$0xf]
    %v202 = vld [vmem:[#allocation7 + $0xc] sm:$0xf]
    %v203 = vld [vmem:[#allocation7 + $0x10] sm:$0xf]
    %v204 = vld [vmem:[#allocation7 + $0x14] sm:$0xf]
    %v205 = vld [vmem:[#allocation7 + $0x18] sm:$0xf]
    %v206 = vld [vmem:[#allocation7 + $0x1c] sm:$0xf]
    %v207 = vld [vmem:[#allocation7 + $0x20] sm:$0xf]
    %v208 = vld [vmem:[#allocation7 + $0x24] sm:$0xf]
    %v209 = vld [vmem:[#allocation7 + $0x28] sm:$0xf]
    %v210 = vld [vmem:[#allocation7 + $0x2c] sm:$0xf]
    %v211 = vld [vmem:[#allocation7 + $0x30] sm:$0xf]
    %v212 = vld [vmem:[#allocation7 + $0x34] sm:$0xf]
    %v213 = vld [vmem:[#allocation7 + $0x38] sm:$0xf]
    %v214 = vld [vmem:[#allocation7 + $0x3c] sm:$0xf]
    %v215 = vld [vmem:[%s4] sm:$0x1]
    %v217 = vlaneseq
    %v218 = vshrl.u32 %v217, 7
    %v219 = vsub.s32 0, %v218
    %v220 = vrot.slane %v215, %v219
    %v238 = vunpack.c.l.b16 %v199
    %v239 = vunpack.c.l.b16 %v200
    %v240 = vunpack.c.l.b16 %v201
    %v241 = vunpack.c.l.b16 %v202
    %v242 = vunpack.c.l.b16 %v203
    %v243 = vunpack.c.l.b16 %v204
    %v244 = vunpack.c.l.b16 %v205
    %v245 = vunpack.c.l.b16 %v206
    %v246 = vunpack.c.l.b16 %v207
    %v247 = vunpack.c.l.b16 %v208
    %v248 = vunpack.c.l.b16 %v209
    %v249 = vunpack.c.l.b16 %v210
    %v250 = vunpack.c.l.b16 %v211
    %v251 = vunpack.c.l.b16 %v212
    %v252 = vunpack.c.l.b16 %v213
    %v253 = vunpack.c.l.b16 %v214
    %v254 = vpack.c.b16 %v239, %v238
    %v255 = vpack.c.b16 %v241, %v240
    %v256 = vpack.c.b16 %v243, %v242
    %v257 = vpack.c.b16 %v245, %v244
    %v258 = vpack.c.b16 %v247, %v246
    %v259 = vpack.c.b16 %v249, %v248
    %v260 = vpack.c.b16 %v251, %v250
    %v261 = vpack.c.b16 %v253, %v252
    %270 = vmatprep.subr.bf16.mxu0 0
    %271 = vmatpush1.bf16.msra.mxu0 %v261
    %272 = vmatprep.subr.bf16.mxu0 0
    %273 = vmatpush1.bf16.msra.mxu0 %v260
    %274 = vmatprep.subr.bf16.mxu0 0
    %275 = vmatpush1.bf16.msra.mxu0 %v259
    %276 = vmatprep.subr.bf16.mxu0 0
    %277 = vmatpush1.bf16.msra.mxu0 %v258
    %278 = vmatprep.subr.bf16.mxu0 0
    %279 = vmatpush1.bf16.msra.mxu0 %v257
    %280 = vmatprep.subr.bf16.mxu0 0
    %281 = vmatpush1.bf16.msra.mxu0 %v256
    %282 = vmatprep.subr.bf16.mxu0 0
    %283 = vmatpush1.bf16.msra.mxu0 %v255
    %284 = vmatprep.subr.bf16.mxu0 0
    %285 = vmatpush1.bf16.msra.mxu0 %v254
    %286 = vmatprep.subr.bf16.mxu0 0
    %287 = vmatpush2.bf16.msra.mxu0 0
    %288 = vmatprep.subr.bf16.mxu0 0
    %289 = vmatpush2.bf16.msra.mxu0 0
    %290 = vmatprep.subr.bf16.mxu0 0
    %291 = vmatpush2.bf16.msra.mxu0 0
    %292 = vmatprep.subr.bf16.mxu0 0
    %293 = vmatpush2.bf16.msra.mxu0 0
    %294 = vmatprep.subr.bf16.mxu0 0
    %295 = vmatpush2.bf16.msra.mxu0 0
    %296 = vmatprep.subr.bf16.mxu0 0
    %297 = vmatpush2.bf16.msra.mxu0 0
    %298 = vmatprep.subr.bf16.mxu0 0
    %299 = vmatpush2.bf16.msra.mxu0 0
    %300 = vmatprep.subr.bf16.mxu0 0
    %301 = vmatpush2.bf16.msra.mxu0 0
    %302 = vmatprep.mubr.bf16.mxu0 0
    %303 = vmatmul.mubr.bf16.gmra.mxu0 %v198
    %v304 = vpop.f32.mrf.mxu0
    %v305 = vadd.f32 %v220, %v304
    %v306 = vpop.f32.mrf.mxu0
    %v307 = vpop.f32.mrf.mxu0
    %v308 = vadd.f32 %v220, %v307
    %v309 = vpop.f32.mrf.mxu0
    %310 = vdwg.mxu0
    %v311 = vmax.f32 %v305, 0.0
    %v312 = vmax.f32 %v308, 0.0
    %v313 = vpack.c.bf16 %v312, %v311
    %v314 = vld [vmem:[#allocation8] sm:$0xf]
    %v315 = vld [vmem:[#allocation8 + $0x4] sm:$0xf]
    %v316 = vld [vmem:[#allocation8 + $0x8] sm:$0xf]
    %v317 = vld [vmem:[#allocation8 + $0xc] sm:$0xf]
    %v318 = vld [vmem:[#allocation8 + $0x10] sm:$0xf]
    %v319 = vld [vmem:[#allocation8 + $0x14] sm:$0xf]
    %v320 = vld [vmem:[#allocation8 + $0x18] sm:$0xf]
    %v321 = vld [vmem:[#allocation8 + $0x1c] sm:$0xf]
    %v322 = vld [vmem:[#allocation8 + $0x20] sm:$0xf]
    %v323 = vld [vmem:[#allocation8 + $0x24] sm:$0xf]
    %v324 = vld [vmem:[#allocation8 + $0x28] sm:$0xf]
    %v325 = vld [vmem:[#allocation8 + $0x2c] sm:$0xf]
    %v326 = vld [vmem:[#allocation8 + $0x30] sm:$0xf]
    %v327 = vld [vmem:[#allocation8 + $0x34] sm:$0xf]
    %v328 = vld [vmem:[#allocation8 + $0x38] sm:$0xf]
    %v329 = vld [vmem:[#allocation8 + $0x3c] sm:$0xf]
    %v330 = vld [vmem:[%s6] sm:$0x1]
    %v332 = vlaneseq
    %v333 = vshrl.u32 %v332, 7
    %v334 = vsub.s32 0, %v333
    %v335 = vrot.slane %v330, %v334
    %v353 = vunpack.c.l.b16 %v314
    %v354 = vunpack.c.l.b16 %v315
    %v355 = vunpack.c.l.b16 %v316
    %v356 = vunpack.c.l.b16 %v317
    %v357 = vunpack.c.l.b16 %v318
    %v358 = vunpack.c.l.b16 %v319
    %v359 = vunpack.c.l.b16 %v320
    %v360 = vunpack.c.l.b16 %v321
    %v361 = vunpack.c.l.b16 %v322
    %v362 = vunpack.c.l.b16 %v323
    %v363 = vunpack.c.l.b16 %v324
    %v364 = vunpack.c.l.b16 %v325
    %v365 = vunpack.c.l.b16 %v326
    %v366 = vunpack.c.l.b16 %v327
    %v367 = vunpack.c.l.b16 %v328
    %v368 = vunpack.c.l.b16 %v329
    %v369 = vpack.c.b16 %v354, %v353
    %v370 = vpack.c.b16 %v356, %v355
    %v371 = vpack.c.b16 %v358, %v357
    %v372 = vpack.c.b16 %v360, %v359
    %v373 = vpack.c.b16 %v362, %v361
    %v374 = vpack.c.b16 %v364, %v363
    %v375 = vpack.c.b16 %v366, %v365
    %v376 = vpack.c.b16 %v368, %v367
    %385 = vmatprep.subr.bf16.mxu0 0
    %386 = vmatpush1.bf16.msra.mxu0 %v376
    %387 = vmatprep.subr.bf16.mxu0 0
    %388 = vmatpush1.bf16.msra.mxu0 %v375
    %389 = vmatprep.subr.bf16.mxu0 0
    %390 = vmatpush1.bf16.msra.mxu0 %v374
    %391 = vmatprep.subr.bf16.mxu0 0
    %392 = vmatpush1.bf16.msra.mxu0 %v373
    %393 = vmatprep.subr.bf16.mxu0 0
    %394 = vmatpush1.bf16.msra.mxu0 %v372
    %395 = vmatprep.subr.bf16.mxu0 0
    %396 = vmatpush1.bf16.msra.mxu0 %v371
    %397 = vmatprep.subr.bf16.mxu0 0
    %398 = vmatpush1.bf16.msra.mxu0 %v370
    %399 = vmatprep.subr.bf16.mxu0 0
    %400 = vmatpush1.bf16.msra.mxu0 %v369
    %401 = vmatprep.subr.bf16.mxu0 0
    %402 = vmatpush2.bf16.msra.mxu0 0
    %403 = vmatprep.subr.bf16.mxu0 0
    %404 = vmatpush2.bf16.msra.mxu0 0
    %405 = vmatprep.subr.bf16.mxu0 0
    %406 = vmatpush2.bf16.msra.mxu0 0
    %407 = vmatprep.subr.bf16.mxu0 0
    %408 = vmatpush2.bf16.msra.mxu0 0
    %409 = vmatprep.subr.bf16.mxu0 0
    %410 = vmatpush2.bf16.msra.mxu0 0
    %411 = vmatprep.subr.bf16.mxu0 0
    %412 = vmatpush2.bf16.msra.mxu0 0
    %413 = vmatprep.subr.bf16.mxu0 0
    %414 = vmatpush2.bf16.msra.mxu0 0
    %415 = vmatprep.subr.bf16.mxu0 0
    %416 = vmatpush2.bf16.msra.mxu0 0
    %417 = vmatprep.mubr.bf16.mxu0 0
    %418 = vmatmul.mubr.bf16.gmra.mxu0 %v313
    %v419 = vpop.f32.mrf.mxu0
    %v420 = vadd.f32 %v335, %v419
    %v421 = vpop.f32.mrf.mxu0
    %v422 = vpop.f32.mrf.mxu0
    %v423 = vadd.f32 %v335, %v422
    %v424 = vpop.f32.mrf.mxu0
    %425 = vdwg.mxu0
    %v426 = vmax.f32 %v420, 0.0
    %v427 = vmax.f32 %v423, 0.0
    %v428 = vpack.c.bf16 %v427, %v426
    %v429 = vld [vmem:[#allocation10] sm:$0xf]
    %v430 = vld [vmem:[#allocation10 + $0x4] sm:$0xf]
    %v431 = vld [vmem:[#allocation10 + $0x8] sm:$0xf]
    %v432 = vld [vmem:[#allocation10 + $0xc] sm:$0xf]
    %v433 = vld [vmem:[#allocation10 + $0x10] sm:$0xf]
    %v434 = vld [vmem:[#allocation10 + $0x14] sm:$0xf]
    %v435 = vld [vmem:[#allocation10 + $0x18] sm:$0xf]
    %v436 = vld [vmem:[#allocation10 + $0x1c] sm:$0xf]
    %v437 = vld [vmem:[#allocation10 + $0x20] sm:$0xf]
    %v438 = vld [vmem:[#allocation10 + $0x24] sm:$0xf]
    %v439 = vld [vmem:[#allocation10 + $0x28] sm:$0xf]
    %v440 = vld [vmem:[#allocation10 + $0x2c] sm:$0xf]
    %v441 = vld [vmem:[#allocation10 + $0x30] sm:$0xf]
    %v442 = vld [vmem:[#allocation10 + $0x34] sm:$0xf]
    %v443 = vld [vmem:[#allocation10 + $0x38] sm:$0xf]
    %v444 = vld [vmem:[#allocation10 + $0x3c] sm:$0xf]
    %v445 = vld [vmem:[%s8] sm:$0x1]
    %v447 = vlaneseq
    %v448 = vshrl.u32 %v447, 7
    %v449 = vsub.s32 0, %v448
    %v450 = vrot.slane %v445, %v449
    %v468 = vunpack.c.l.b16 %v429
    %v469 = vunpack.c.l.b16 %v430
    %v470 = vunpack.c.l.b16 %v431
    %v471 = vunpack.c.l.b16 %v432
    %v472 = vunpack.c.l.b16 %v433
    %v473 = vunpack.c.l.b16 %v434
    %v474 = vunpack.c.l.b16 %v435
    %v475 = vunpack.c.l.b16 %v436
    %v476 = vunpack.c.l.b16 %v437
    %v477 = vunpack.c.l.b16 %v438
    %v478 = vunpack.c.l.b16 %v439
    %v479 = vunpack.c.l.b16 %v440
    %v480 = vunpack.c.l.b16 %v441
    %v481 = vunpack.c.l.b16 %v442
    %v482 = vunpack.c.l.b16 %v443
    %v483 = vunpack.c.l.b16 %v444
    %v484 = vpack.c.b16 %v469, %v468
    %v485 = vpack.c.b16 %v471, %v470
    %v486 = vpack.c.b16 %v473, %v472
    %v487 = vpack.c.b16 %v475, %v474
    %v488 = vpack.c.b16 %v477, %v476
    %v489 = vpack.c.b16 %v479, %v478
    %v490 = vpack.c.b16 %v481, %v480
    %v491 = vpack.c.b16 %v483, %v482
    %500 = vmatprep.subr.bf16.mxu0 0
    %501 = vmatpush1.bf16.msra.mxu0 %v491
    %502 = vmatprep.subr.bf16.mxu0 0
    %503 = vmatpush1.bf16.msra.mxu0 %v490
    %504 = vmatprep.subr.bf16.mxu0 0
    %505 = vmatpush1.bf16.msra.mxu0 %v489
    %506 = vmatprep.subr.bf16.mxu0 0
    %507 = vmatpush1.bf16.msra.mxu0 %v488
    %508 = vmatprep.subr.bf16.mxu0 0
    %509 = vmatpush1.bf16.msra.mxu0 %v487
    %510 = vmatprep.subr.bf16.mxu0 0
    %511 = vmatpush1.bf16.msra.mxu0 %v486
    %512 = vmatprep.subr.bf16.mxu0 0
    %513 = vmatpush1.bf16.msra.mxu0 %v485
    %514 = vmatprep.subr.bf16.mxu0 0
    %515 = vmatpush1.bf16.msra.mxu0 %v484
    %516 = vmatprep.subr.bf16.mxu0 0
    %517 = vmatpush2.bf16.msra.mxu0 0
    %518 = vmatprep.subr.bf16.mxu0 0
    %519 = vmatpush2.bf16.msra.mxu0 0
    %520 = vmatprep.subr.bf16.mxu0 0
    %521 = vmatpush2.bf16.msra.mxu0 0
    %522 = vmatprep.subr.bf16.mxu0 0
    %523 = vmatpush2.bf16.msra.mxu0 0
    %524 = vmatprep.subr.bf16.mxu0 0
    %525 = vmatpush2.bf16.msra.mxu0 0
    %526 = vmatprep.subr.bf16.mxu0 0
    %527 = vmatpush2.bf16.msra.mxu0 0
    %528 = vmatprep.subr.bf16.mxu0 0
    %529 = vmatpush2.bf16.msra.mxu0 0
    %530 = vmatprep.subr.bf16.mxu0 0
    %531 = vmatpush2.bf16.msra.mxu0 0
    %532 = vmatprep.mubr.bf16.mxu0 0
    %533 = vmatmul.mubr.bf16.gmra.mxu0 %v428
    %v534 = vpop.f32.mrf.mxu0
    %v535 = vadd.f32 %v450, %v534
    %v536 = vpop.f32.mrf.mxu0
    %v537 = vpop.f32.mrf.mxu0
    %v538 = vadd.f32 %v450, %v537
    %v539 = vpop.f32.mrf.mxu0
    %540 = vdwg.mxu0
    %v541 = vmax.f32 %v535, 0.0
    %v542 = vmax.f32 %v538, 0.0
    %v543 = vpack.c.bf16 %v542, %v541
    %v544 = vld [vmem:[#allocation11] sm:$0xf]
    %v545 = vld [vmem:[#allocation11 + $0x4] sm:$0xf]
    %v546 = vld [vmem:[#allocation11 + $0x8] sm:$0xf]
    %v547 = vld [vmem:[#allocation11 + $0xc] sm:$0xf]
    %v548 = vld [vmem:[#allocation11 + $0x10] sm:$0xf]
    %v549 = vld [vmem:[#allocation11 + $0x14] sm:$0xf]
    %v550 = vld [vmem:[#allocation11 + $0x18] sm:$0xf]
    %v551 = vld [vmem:[#allocation11 + $0x1c] sm:$0xf]
    %v552 = vld [vmem:[#allocation11 + $0x20] sm:$0xf]
    %v553 = vld [vmem:[#allocation11 + $0x24] sm:$0xf]
    %v554 = vld [vmem:[#allocation11 + $0x28] sm:$0xf]
    %v555 = vld [vmem:[#allocation11 + $0x2c] sm:$0xf]
    %v556 = vld [vmem:[#allocation11 + $0x30] sm:$0xf]
    %v557 = vld [vmem:[#allocation11 + $0x34] sm:$0xf]
    %v558 = vld [vmem:[#allocation11 + $0x38] sm:$0xf]
    %v559 = vld [vmem:[#allocation11 + $0x3c] sm:$0xf]
    %v560 = vld [vmem:[%s10] sm:$0x1]
    %v562 = vlaneseq
    %v563 = vshrl.u32 %v562, 7
    %v564 = vsub.s32 0, %v563
    %v565 = vrot.slane %v560, %v564
    %v583 = vunpack.c.l.b16 %v544
    %v584 = vunpack.c.l.b16 %v545
    %v585 = vunpack.c.l.b16 %v546
    %v586 = vunpack.c.l.b16 %v547
    %v587 = vunpack.c.l.b16 %v548
    %v588 = vunpack.c.l.b16 %v549
    %v589 = vunpack.c.l.b16 %v550
    %v590 = vunpack.c.l.b16 %v551
    %v591 = vunpack.c.l.b16 %v552
    %v592 = vunpack.c.l.b16 %v553
    %v593 = vunpack.c.l.b16 %v554
    %v594 = vunpack.c.l.b16 %v555
    %v595 = vunpack.c.l.b16 %v556
    %v596 = vunpack.c.l.b16 %v557
    %v597 = vunpack.c.l.b16 %v558
    %v598 = vunpack.c.l.b16 %v559
    %v599 = vpack.c.b16 %v584, %v583
    %v600 = vpack.c.b16 %v586, %v585
    %v601 = vpack.c.b16 %v588, %v587
    %v602 = vpack.c.b16 %v590, %v589
    %v603 = vpack.c.b16 %v592, %v591
    %v604 = vpack.c.b16 %v594, %v593
    %v605 = vpack.c.b16 %v596, %v595
    %v606 = vpack.c.b16 %v598, %v597
    %615 = vmatprep.subr.bf16.mxu0 0
    %616 = vmatpush1.bf16.msra.mxu0 %v606
    %617 = vmatprep.subr.bf16.mxu0 0
    %618 = vmatpush1.bf16.msra.mxu0 %v605
    %619 = vmatprep.subr.bf16.mxu0 0
    %620 = vmatpush1.bf16.msra.mxu0 %v604
    %621 = vmatprep.subr.bf16.mxu0 0
    %622 = vmatpush1.bf16.msra.mxu0 %v603
    %623 = vmatprep.subr.bf16.mxu0 0
    %624 = vmatpush1.bf16.msra.mxu0 %v602
    %625 = vmatprep.subr.bf16.mxu0 0
    %626 = vmatpush1.bf16.msra.mxu0 %v601
    %627 = vmatprep.subr.bf16.mxu0 0
    %628 = vmatpush1.bf16.msra.mxu0 %v600
    %629 = vmatprep.subr.bf16.mxu0 0
    %630 = vmatpush1.bf16.msra.mxu0 %v599
    %631 = vmatprep.subr.bf16.mxu0 0
    %632 = vmatpush2.bf16.msra.mxu0 0
    %633 = vmatprep.subr.bf16.mxu0 0
    %634 = vmatpush2.bf16.msra.mxu0 0
    %635 = vmatprep.subr.bf16.mxu0 0
    %636 = vmatpush2.bf16.msra.mxu0 0
    %637 = vmatprep.subr.bf16.mxu0 0
    %638 = vmatpush2.bf16.msra.mxu0 0
    %639 = vmatprep.subr.bf16.mxu0 0
    %640 = vmatpush2.bf16.msra.mxu0 0
    %641 = vmatprep.subr.bf16.mxu0 0
    %642 = vmatpush2.bf16.msra.mxu0 0
    %643 = vmatprep.subr.bf16.mxu0 0
    %644 = vmatpush2.bf16.msra.mxu0 0
    %645 = vmatprep.subr.bf16.mxu0 0
    %646 = vmatpush2.bf16.msra.mxu0 0
    %647 = vmatprep.mubr.bf16.mxu0 0
    %648 = vmatmul.mubr.bf16.gmra.mxu0 %v543
    %v649 = vpop.f32.mrf.mxu0
    %v650 = vadd.f32 %v565, %v649
    %v651 = vpop.f32.mrf.mxu0
    %v652 = vpop.f32.mrf.mxu0
    %v653 = vadd.f32 %v565, %v652
    %v654 = vpop.f32.mrf.mxu0
    %655 = vdwg.mxu0
    %656 = vmax.xlane.f32.xlu0 %v650
    %v657 = vpop.xlane.xlu0 %656
    %658 = vmax.xlane.f32.xlu0 %v653
    %v659 = vpop.xlane.xlu0 %658
    %v660 = vsub.f32 %v650, %v657
    %v661 = vsub.f32 %v653, %v659
    %v662 = vmul.f32 %v660, 1.442695
    %v663 = vpow.pop %v662
    %v664 = vmul.f32 %v661, 1.442695
    %v665 = vpow.pop %v664
    %666 = vadd.xlane.f32.xlu0 %v663
    %v667 = vpop.xlane.xlu0 %666
    %668 = vadd.xlane.f32.xlu0 %v665
    %v669 = vpop.xlane.xlu0 %668
    %v670 = vlog2.pop %v667
    %v671 = vmul.f32 %v670, 0.6931472
    %v672 = vlog2.pop %v669
    %v673 = vmul.f32 %v672, 0.6931472
    %v674 = vsub.f32 %v660, %v671
    %v675 = vsub.f32 %v661, %v673
    %676 = vst [vmem:[#allocation13] sm:$0xff] %v650
    %677 = vst [vmem:[#allocation13 + $0x8] sm:$0xff] %v653
    %678 = vst [vmem:[#allocation14] sm:$0xff] %v674
    %679 = vst [vmem:[#allocation14 + $0x8] sm:$0xff] %v675
    // Predicated region
    $region70: #{tpu_custom_call.1} parent=1 // pred_check
      _
    $region71: #{tpu_custom_call.1} parent=1 // pred_check_branch
      %681 = sbr.rel (0) target = $region73
    $region72: #{tpu_custom_call.1} parent=1 // pred_region
      %s683 = ssub.s32 256, 256
      %684 = vsyncadd [#allocation4], %s683
      %s685 = sshll.u32 [#allocation13], 4
      %s686 = int_to_ptr.vmem [resolvable:$true] %s685
      %691 = dma.vmem_to_hbm [thread:$0]  %s686, 256, %s11, [#allocation4], 128, 128, 8
    $region73: #{tpu_custom_call.1} parent=1 // pred_fallthru
      _
    // Predicated region
    $region74: #{tpu_custom_call.1} parent=1 // pred_check
      _
    $region75: #{tpu_custom_call.1} parent=1 // pred_check_branch
      %693 = sbr.rel (0) target = $region77
    $region76: #{tpu_custom_call.1} parent=1 // pred_region
      %s695 = ssub.s32 256, 256
      %696 = vsyncadd [#allocation15], %s695
      %s697 = sshll.u32 [#allocation14], 4
      %s698 = int_to_ptr.vmem [resolvable:$true] %s697
      %703 = dma.vmem_to_hbm [thread:$0]  %s698, 256, %s12, [#allocation15], 128, 128, 8
    $region77: #{tpu_custom_call.1} parent=1 // pred_fallthru
      _
    // Predicated region
    $region78: #{tpu_custom_call.1} parent=1 // pred_check
      _
    $region79: #{tpu_custom_call.1} parent=1 // pred_check_branch
      %705 = sbr.rel (0) target = $region81
    $region80: #{tpu_custom_call.1} parent=1 // pred_region
      %706 = dma.done [#allocation4], 256
    $region81: #{tpu_custom_call.1} parent=1 // pred_fallthru
      _
    // Predicated region
    $region82: #{tpu_custom_call.1} parent=1 // pred_check
      _
    $region83: #{tpu_custom_call.1} parent=1 // pred_check_branch
      %708 = sbr.rel (0) target = $region85
    $region84: #{tpu_custom_call.1} parent=1 // pred_region
      %709 = dma.done [#allocation15], 256
    $region85: #{tpu_custom_call.1} parent=1 // pred_fallthru
      _
    %710 = vsyncpa [#allocation3], 1
    %711 = vsyncpa [#allocation6], 1
    %712 = vsyncpa [#allocation9], 1
    %713 = vsyncpa [#allocation12], 1
    %714 = vsyncpa [#allocation4], 1
    %715 = vsyncpa [#allocation15], 1

</llo_original>
